<compile_context>
chip_gen: v5e
topology: v5e:2x2
jax: 0.10.0
libtpu: 0.0.40
codegen_flags: <defaults>
</compile_context>

<pallas_src>
import jax
import jax.numpy as jnp
from jax.experimental import pallas as pl
from jax.experimental.pallas import tpu as pltpu


def _round_up(x, m):
    return (x + m - 1) // m * m


def _smooth_ce_kernel(ratio_ref, y_pred_ref, labels_ref, out_ref):
    """Per-row smoothed-CE loss for one (block_rows, K) tile of logits.

    ratio_ref  : (1,) f32 in SMEM
    y_pred_ref : (block_rows, K) logits (native dtype) in VMEM
    labels_ref : (block_rows, 1) int32 class indices in VMEM
    out_ref    : (block_rows, 1) f32 per-row loss in VMEM
    """
    ratio = ratio_ref[0]                              # scalar from SMEM
    x = y_pred_ref[...].astype(jnp.float32)           # upcast in-kernel only
    labels = labels_ref[...]                          # (bm, 1) int32
    bm, K = x.shape

    # Numerically-stable logZ = logsumexp(x) per row.
    m = jnp.max(x, axis=-1, keepdims=True)            # (bm, 1)
    z = x - m
    lse = jnp.log(jnp.sum(jnp.exp(z), axis=-1, keepdims=True))
    log_z = lse + m                                    # (bm, 1)

    # sum_j x[j] and x[label] (gather via lane-iota mask on the VPU).
    sum_x = jnp.sum(x, axis=-1, keepdims=True)         # (bm, 1)
    col = jax.lax.broadcasted_iota(jnp.int32, (bm, K), 1)
    x_label = jnp.sum(jnp.where(col == labels, x, 0.0),
                      axis=-1, keepdims=True)          # (bm, 1)

    # per_row = (1-r)*(logZ - x_label) + (r/K)*(K*logZ - sum_x)
    #         = logZ - (1-r)*x_label - (r/K)*sum_x
    out_ref[...] = log_z - (1.0 - ratio) * x_label - (ratio / K) * sum_x


def smooth_cross_entropy_from_labels(y_pred, labels, ratio, *, block_rows=None):
    """Label-smoothed cross entropy from logits + integer class labels."""
    b, K = y_pred.shape
    itemsize = jnp.dtype(y_pred.dtype).itemsize

    if block_rows is None:
        # Keep each logits block <= ~4 MiB so 2x double-buffered blocks fit
        # comfortably inside the default scoped VMEM limit on v5e/v6e/v7x.
        target_bytes = 4 * 1024 * 1024
        vmem_cap_rows = max(8, (target_bytes // (K * itemsize)) // 8 * 8)
        block_rows = min(512, _round_up(b, 8), vmem_cap_rows)
    block_rows = max(8, _round_up(block_rows, 8))

    b_pad = _round_up(b, block_rows)
    if b_pad != b:
        # Padded rows are zeros / label 0 -> finite loss, sliced off below.
        y_pred = jnp.pad(y_pred, ((0, b_pad - b), (0, 0)))
        labels = jnp.pad(labels, (0, b_pad - b))

    labels2d = labels.astype(jnp.int32).reshape(b_pad, 1)
    ratio_arr = jnp.asarray([ratio], dtype=jnp.float32)
    grid = (b_pad // block_rows,)

    per_row = pl.pallas_call(
        _smooth_ce_kernel,
        out_shape=jax.ShapeDtypeStruct((b_pad, 1), jnp.float32),
        grid_spec=pltpu.PrefetchScalarGridSpec(
            num_scalar_prefetch=0,
            grid=grid,
            in_specs=[
                pl.BlockSpec(memory_space=pltpu.MemorySpace.SMEM),      # ratio
                pl.BlockSpec((block_rows, K), lambda i: (i, 0)),        # logits
                pl.BlockSpec((block_rows, 1), lambda i: (i, 0)),        # labels
            ],
            out_specs=pl.BlockSpec((block_rows, 1), lambda i: (i, 0)),  # per-row loss
        ),
        compiler_params=pltpu.CompilerParams(
            dimension_semantics=("parallel",)),
    )(ratio_arr, y_pred, labels2d)

    # Tiny final reduction (<= b f32) in plain JAX; padded rows ignored.
    return jnp.sum(per_row[:b, 0]) / b


def smooth_cross_entropy(y_pred, y, ratio):
    """Compatibility wrapper matching the original module signature.

    Assumes `y` is one-hot (the module's intended usage); the kernel only
    streams the logits and the integer labels derived from `y`.
    """
    labels = jnp.argmax(y, axis=-1).astype(jnp.int32)
    return smooth_cross_entropy_from_labels(y_pred, labels, ratio)


def _reference(y_pred, y, ratio):
    _, K = y.shape
    y_exp = -jax.nn.log_softmax(y_pred.astype(jnp.float32), axis=-1)
    y_smooth = (1.0 - ratio) * y.astype(jnp.float32) + ratio / K
    return (y_smooth * y_exp).sum(axis=1).mean()


if __name__ == "__main__":
    key = jax.random.PRNGKey(0)
    k1, k2, k3, k4 = jax.random.split(key, 4)

    ratio = 0.1

    # --- test 1: f32 logits, one-hot compat wrapper (matches original module) ---
    b, K = 8, 32
    y_pred = jax.random.normal(k1, (b, K), dtype=jnp.float32)
    labels = jax.random.randint(k2, (b,), 0, K)
    y = jax.nn.one_hot(labels, K, dtype=jnp.float32)

    loss = jax.block_until_ready(smooth_cross_entropy(y_pred, y, ratio))
    ref = _reference(y_pred, y, ratio)
    assert jnp.allclose(loss, ref, atol=1e-5, rtol=1e-5), (loss, ref)

    # --- test 2: bf16 logits streamed natively (no wrapper upcast) ---
    y_pred_bf16 = y_pred.astype(jnp.bfloat16)
    loss_bf = jax.block_until_ready(
        smooth_cross_entropy_from_labels(y_pred_bf16, labels, ratio))
    ref_bf = _reference(y_pred_bf16, y, ratio)
    assert jnp.allclose(loss_bf, ref_bf, atol=1e-4, rtol=1e-4), (loss_bf, ref_bf)

    # --- test 3: multi-block grid + padded (non multiple-of-8) batch ---
    b2 = 20
    y_pred2 = jax.random.normal(k3, (b2, K), dtype=jnp.float32)
    labels2 = jax.random.randint(k4, (b2,), 0, K)
    y2 = jax.nn.one_hot(labels2, K, dtype=jnp.float32)
    loss2 = jax.block_until_ready(
        smooth_cross_entropy_from_labels(y_pred2, labels2, ratio, block_rows=8))
    ref2 = _reference(y_pred2, y2, ratio)
    assert jnp.allclose(loss2, ref2, atol=1e-5, rtol=1e-5), (loss2, ref2)

    print("KERNEL_OK")
</pallas_src>

<mosaic_0001>
module attributes {stable_mosaic.version = 11 : i64} {
  func.func @_smooth_ce_kernel(%arg0: i32, %arg1: memref<1xf32, #tpu.memory_space<smem>>, %arg2: memref<8x32xf32, #tpu.memory_space<vmem>>, %arg3: memref<8x1xi32, #tpu.memory_space<vmem>>, %arg4: memref<8x1xf32, #tpu.memory_space<vmem>>) attributes {dimension_semantics = [#tpu.dimension_semantics<parallel>], iteration_bounds = array<i64: 1>, scalar_prefetch = 0 : i64, scratch_operands = 0 : i64, tpu.core_type = #tpu.core_type<tc>, window_params = [{transform_indices = @transform_0, window_bounds = array<i64: 1>}, {transform_indices = @transform_1, window_bounds = array<i64: 8, 32>}, {transform_indices = @transform_2, window_bounds = array<i64: 8, 1>}, {transform_indices = @transform_3, window_bounds = array<i64: 8, 1>}]} {
    %c0 = arith.constant 0 : index
    %0 = memref.load %arg1[%c0] : memref<1xf32, #tpu.memory_space<smem>>
    %c0_0 = arith.constant 0 : index
    %c0_1 = arith.constant 0 : index
    %1 = vector.load %arg2[%c0_0, %c0_1] : memref<8x32xf32, #tpu.memory_space<vmem>>, vector<8x32xf32>
    %c0_2 = arith.constant 0 : index
    %c0_3 = arith.constant 0 : index
    %2 = vector.load %arg3[%c0_2, %c0_3] : memref<8x1xi32, #tpu.memory_space<vmem>>, vector<8x1xi32>
    %cst = arith.constant dense<0xFF800000> : vector<8xf32>
    %3 = vector.multi_reduction <maximumf>, %1, %cst [1] : vector<8x32xf32> to vector<8xf32>
    %4 = vector.shape_cast %3 : vector<8xf32> to vector<8x1xf32>
    %5 = vector.broadcast %4 : vector<8x1xf32> to vector<8x32xf32>
    %6 = arith.subf %1, %5 : vector<8x32xf32>
    %7 = math.exp %6 : vector<8x32xf32>
    %cst_4 = arith.constant dense<0.000000e+00> : vector<8xf32>
    %8 = vector.multi_reduction <add>, %7, %cst_4 [1] : vector<8x32xf32> to vector<8xf32>
    %9 = vector.shape_cast %8 : vector<8xf32> to vector<8x1xf32>
    %10 = math.log %9 : vector<8x1xf32>
    %11 = arith.addf %10, %4 : vector<8x1xf32>
    %cst_5 = arith.constant dense<0.000000e+00> : vector<8xf32>
    %12 = vector.multi_reduction <add>, %1, %cst_5 [1] : vector<8x32xf32> to vector<8xf32>
    %13 = vector.shape_cast %12 : vector<8xf32> to vector<8x1xf32>
    %14 = tpu.iota {dimensions = array<i32: 1>} : vector<8x32xi32>
    %15 = vector.broadcast %2 : vector<8x1xi32> to vector<8x32xi32>
    %16 = arith.cmpi eq, %14, %15 : vector<8x32xi32>
    %cst_6 = arith.constant 0.000000e+00 : f32
    %17 = vector.broadcast %cst_6 : f32 to vector<8x32xf32>
    %18 = arith.select %16, %1, %17 : vector<8x32xi1>, vector<8x32xf32>
    %cst_7 = arith.constant dense<0.000000e+00> : vector<8xf32>
    %19 = vector.multi_reduction <add>, %18, %cst_7 [1] : vector<8x32xf32> to vector<8xf32>
    %20 = vector.shape_cast %19 : vector<8xf32> to vector<8x1xf32>
    %cst_8 = arith.constant 1.000000e+00 : f32
    %21 = arith.subf %cst_8, %0 : f32
    %22 = vector.broadcast %21 : f32 to vector<8x1xf32>
    %23 = arith.mulf %22, %20 : vector<8x1xf32>
    %24 = arith.subf %11, %23 : vector<8x1xf32>
    %cst_9 = arith.constant 3.200000e+01 : f32
    %25 = arith.divf %0, %cst_9 : f32
    %26 = vector.broadcast %25 : f32 to vector<8x1xf32>
    %27 = arith.mulf %26, %13 : vector<8x1xf32>
    %28 = arith.subf %24, %27 : vector<8x1xf32>
    %c0_10 = arith.constant 0 : index
    %c0_11 = arith.constant 0 : index
    %29 = vector.load %arg4[%c0_10, %c0_11] : memref<8x1xf32, #tpu.memory_space<vmem>>, vector<8x1xf32>
    tpu.vector_store %arg4[%c0_10, %c0_11], %28 {strides = array<i32>} : memref<8x1xf32, #tpu.memory_space<vmem>>, vector<8x1xf32>,
    return
  }
  func.func @transform_0(%arg0: i32) -> i32 {
    %c0_i32 = arith.constant 0 : i32
    %c0_i32_0 = arith.constant 0 : i32
    return %c0_i32 : i32
  }
  func.func @transform_1(%arg0: i32) -> (i32, i32) {
    %c0_i32 = arith.constant 0 : i32
    %c0_i32_0 = arith.constant 0 : i32
    return %arg0, %c0_i32 : i32, i32
  }
  func.func @transform_2(%arg0: i32) -> (i32, i32) {
    %c0_i32 = arith.constant 0 : i32
    %c0_i32_0 = arith.constant 0 : i32
    return %arg0, %c0_i32 : i32, i32
  }
  func.func @transform_3(%arg0: i32) -> (i32, i32) {
    %c0_i32 = arith.constant 0 : i32
    %c0_i32_0 = arith.constant 0 : i32
    return %arg0, %c0_i32 : i32, i32
  }
}

</mosaic_0001>

<llo_original>
// kernel: tpu_custom_call.1
$region0: #{tpu_custom_call.1}
  #allocation0 [shape = 'u32[]', space=smem, size = 0x4, offset = 0x4, fixed_abs, tag = 'smem constant byte address 0x4 - core index']
  #allocation1 [shape = 'u32[72,128]{1,0:T(1,128)}', space=vmem, size = 0x9000, scoped, tag = 'internal scratch']
  #allocation2 [shape = 'f32[1]{0:T(128)S(6)}', space=smem, size = 0x200, scoped, tag = 'scoped memory for tpu_custom_call.1']
  %s0 = inlined_call_operand.<no memory space> [shape: f32[1], index: 0, kind: input, shape index: {}]
  %s1 = inlined_call_operand.vmem [shape: f32[8,32], index: 1, kind: input, shape index: {}]
  %s2 = inlined_call_operand.vmem [shape: s32[8,1], index: 2, kind: input, shape index: {}]
  %s3 = inlined_call_operand.vmem [shape: f32[8,1], index: 3, kind: output, shape index: {}]
  %s4 = sld [smem:[#allocation0]]
  $region22: #{tpu_custom_call.1} parent=0
    _
  %s6 = ssub.s32 1, %s4
  %s7 = scalar_select 0, %s6, %s4
  %8 = sst [smem:[#allocation2]] %s0
  // Predicated region
  $region2: #{tpu_custom_call.1} parent=0 // pred_check
    _
  $region3: #{tpu_custom_call.1} parent=0 // pred_check_branch
    %10 = sbr.rel (0) target = $region5
  $region4: #{tpu_custom_call.1} parent=0 // pred_region
    _
  $region5: #{tpu_custom_call.1} parent=0 // pred_fallthru
    _
  // Predicated region
  $region6: #{tpu_custom_call.1} parent=0 // pred_check
    _
  $region7: #{tpu_custom_call.1} parent=0 // pred_check_branch
    %12 = sbr.rel (0) target = $region9
  $region8: #{tpu_custom_call.1} parent=0 // pred_region
    _
  $region9: #{tpu_custom_call.1} parent=0 // pred_fallthru
    _
  // Predicated region
  $region10: #{tpu_custom_call.1} parent=0 // pred_check
    _
  $region11: #{tpu_custom_call.1} parent=0 // pred_check_branch
    %14 = sbr.rel (0) target = $region13
  $region12: #{tpu_custom_call.1} parent=0 // pred_region
    _
  $region13: #{tpu_custom_call.1} parent=0 // pred_fallthru
    _
  %s15 = sld [smem:[#allocation2]]
  %v16 = vld [vmem:[%s1] sm:$0xff]
  %v17 = vld [vmem:[%s2] sm:$0xff]
  %vm18 = vcmask 261120
  %v19 = vsel %vm18, %v16, -inf
  %20 = vmax.xlane.f32.xlu0 %v19
  %v21 = vpop.xlane.xlu0 %20
  %v22 = vsub.f32 %v16, %v21
  %v23 = vmul.f32 %v22, 1.442695
  %v24 = vpow.pop %v23
  %v25 = vsel %vm18, %v24, 0.0
  %26 = vadd.xlane.f32.xlu0 %v25
  %v27 = vpop.xlane.xlu0 %26
  %v28 = vlog2.pop %v27
  %v29 = vmul.f32 %v28, 0.6931472
  %v30 = vadd.f32 %v29, %v21
  %v31 = vsel %vm18, %v16, 0.0
  %32 = vadd.xlane.f32.xlu0 %v31
  %v33 = vpop.xlane.xlu0 %32
  %v34 = vlaneseq
  %v35 = vand.u32 %v34, 127
  %36 = vset.pattern.permute.xlu0 0
  %37 = vperm.xlu0 %36, %v17
  %v38 = vpop.permute.xlu0 %37
  %vm39 = vcmp.eq.s32.totalorder %v35, %v38
  %v40 = vsel %vm39, %v16, 0.0
  %v41 = vsel %vm18, %v40, 0.0
  %42 = vadd.xlane.f32.xlu0 %v41
  %v43 = vpop.xlane.xlu0 %42
  %s44 = ssub.f32 1.0, %s15
  %v45 = vstv %s44
  %v46 = vmul.f32 %v45, %v43
  %v47 = vsub.f32 %v30, %v46
  %v48 = vrcp.pop 32.0
  %v49 = vmul.f32 32.0, %v48
  %v50 = vsub.f32 1.0, %v49
  %v51 = vmul.f32 %v48, %v50
  %v52 = vadd.f32 %v48, %v51
  %vm53 = vweird.f32 %v48
  %v54 = vsel %vm53, %v48, %v52
  %s55 = vtos %v54
  %s56 = smul.f32 %s15, %s55
  %v57 = vstv %s56
  %v58 = vmul.f32 %v57, %v33
  %v59 = vsub.f32 %v47, %v58
  %vm60 = vcmask 7168
  %61 = vst.msk [vmem:[%s3] sm:$0xff] %vm60, %v59
  // Predicated region
  $region14: #{tpu_custom_call.1} parent=0 // pred_check
    _
  $region15: #{tpu_custom_call.1} parent=0 // pred_check_branch
    %63 = sbr.rel (0) target = $region17
  $region16: #{tpu_custom_call.1} parent=0 // pred_region
    _
  $region17: #{tpu_custom_call.1} parent=0 // pred_fallthru
    _
  // Predicated region
  $region18: #{tpu_custom_call.1} parent=0 // pred_check
    _
  $region19: #{tpu_custom_call.1} parent=0 // pred_check_branch
    %65 = sbr.rel (0) target = $region21
  $region20: #{tpu_custom_call.1} parent=0 // pred_region
    _
  $region21: #{tpu_custom_call.1} parent=0 // pred_fallthru
    _

</llo_original>
